<compile_context>
chip_gen: v6e
topology: v6e:2x2x1
jax: 0.10.0
libtpu: 0.0.40
codegen_flags: <defaults>
</compile_context>

<pallas_src>
import functools

import jax
import jax.numpy as jnp
from jax import lax
from jax.experimental import pallas as pl
from jax.experimental.pallas import tpu as pltpu


# ----------------------------------------------------------------------------
# Kernel: one batch block per grid step.
#   xp_ref     : (1, C, P + 2*pad)   zero-padded activations, channels x lanes
#   coords_ref : (2, P)              per-lane (y, x) image coordinates (int32)
#   w_ref      : (2*O, 9*C3 + C1)    packed weights ([out3 ; out1] rows)
#   out_ref    : (batch_block, O, HW)
#   xb_ref     : VMEM scratch (9*C3 + C1, P)  in-VMEM im2col ("X_big")
# ----------------------------------------------------------------------------
def spconv_kernel(xp_ref, coords_ref, w_ref, out_ref, xb_ref, *,
                  H, W, HW, C3, O, pad):
    nb = out_ref.shape[0]          # batch elements folded into this block
    P = nb * HW                    # lane extent of the working slab

    yy = coords_ref[0:1, :]        # (1, P) row index within each image
    xx = coords_ref[1:2, :]        # (1, P) col index within each image

    # Edge-validity masks, computed once and reused across the 8 shifted taps.
    m_top = yy >= 1                # reading row y-1 is in-bounds
    m_bot = yy <= H - 2            # reading row y+1 is in-bounds
    m_lft = xx >= 1                # reading col x-1 is in-bounds
    m_rgt = xx <= W - 2            # reading col x+1 is in-bounds
    row_mask = {-1: m_top, 0: None, 1: m_bot}
    col_mask = {-1: m_lft, 0: None, 1: m_rgt}

    # ---- build the im2col LHS in VMEM: 9 shifted/masked taps of x3, then x1 ----
    t = 0
    for dy in (-1, 0, 1):
        for dx in (-1, 0, 1):
            off = dy * W + dx
            win = xp_ref[0, :C3, pad + off: pad + off + P]       # (C3, P)
            conds = [m for m in (row_mask[dy], col_mask[dx]) if m is not None]
            if conds:
                m = functools.reduce(jnp.logical_and, conds)     # (1, P)
                win = jnp.where(m, win, 0.0)
            xb_ref[t * C3:(t + 1) * C3, :] = win
            t += 1
    # 1x1-branch input (unshifted centre window of the remaining channels)
    xb_ref[9 * C3:, :] = xp_ref[0, C3:, pad:pad + P]

    # ---- single fused MXU matmul: [out3 ; out1] = W_pack @ X_big ----
    of = jnp.dot(w_ref[...], xb_ref[...],
                 preferred_element_type=jnp.float32)             # (2*O, P) f32

    # ---- per-batch global average pool + 2-way softmax + recombination ----
    for b in range(nb):
        s = slice(b * HW, (b + 1) * HW)
        o3 = of[:O, s]                                           # (O, HW)
        o1 = of[O:, s]                                           # (O, HW)
        r3 = jnp.mean(o3, axis=1, keepdims=True)                 # (O, 1)
        r1 = jnp.mean(o1, axis=1, keepdims=True)
        mx = jnp.maximum(r3, r1)                                 # den in [1, 2]
        e3 = jnp.exp(r3 - mx)
        e1 = jnp.exp(r1 - mx)
        den = e3 + e1
        inv = pl.reciprocal(den, approx=True)                    # EUP slot
        inv = inv * (2.0 - den * inv)                            # Newton refine
        a3 = e3 * inv                                            # softmax weight
        # o3*a3 + o1*(1-a3) == o1 + a3*(o3 - o1)  (one fewer multiply)
        out_ref[b] = (o1 + (o3 - o1) * a3).astype(out_ref.dtype)


# ----------------------------------------------------------------------------
# Wrapper: layout plumbing + weight packing (glue) + pallas_call
# ----------------------------------------------------------------------------
def spconv_forward(x_nchw, w_dw, w_pw, w_11, *, stride=1, scale_ratio=2,
                   compute_dtype=jnp.float32, batch_block=None):
    assert stride == 1  # TODO(synk): stride==2 avgpool path not implemented
    B, C, H, W = x_nchw.shape
    O = w_pw.shape[0]
    C3 = int(C // scale_ratio)
    C1 = C - C3
    assert O % 2 == 0 and C3 % 2 == 0, "groups=2 conv requires even O and C3"
    Og, Cg = O // 2, C3 // 2
    HW = H * W
    if batch_block is None:
        batch_block = B            # toy sizes: fold the whole batch into one step
    assert B % batch_block == 0
    nblk = B // batch_block
    P_blk = batch_block * HW
    pad = W + 1                    # covers every 3x3 tap shift in the flat layout
    Pp = P_blk + 2 * pad
    Ktot = 9 * C3 + C1

    # activations: NCHW -> (nblk, C, batch_block*HW), zero-padded along lanes
    xt = jnp.transpose(x_nchw.reshape(nblk, batch_block, C, HW),
                       (0, 2, 1, 3)).reshape(nblk, C, P_blk)
    xp = jnp.pad(xt, ((0, 0), (0, 0), (pad, pad))).astype(compute_dtype)

    # per-lane (y, x) coordinates (same for every batch block)
    lane = jnp.arange(P_blk, dtype=jnp.int32)
    pos = lane % HW
    coords = jnp.stack([pos // W, pos % W], axis=0).astype(jnp.int32)  # (2, P_blk)

    # packed weight (2*O, 9*C3 + C1):
    #   rows [0:O)   -> out3: grouped(2) 3x3 block-diag per tap + pointwise 1x1
    #                   folded into the centre tap (t = 4)
    #   rows [O:2*O) -> out1: 1x1-branch weights
    w3 = jnp.zeros((3, 3, C3, O), jnp.float32)
    for g in range(2):
        blk = jnp.transpose(w_dw[g * Og:(g + 1) * Og], (2, 3, 1, 0))   # (3,3,Cg,Og)
        w3 = w3.at[:, :, g * Cg:(g + 1) * Cg, g * Og:(g + 1) * Og].set(blk)
    w3_rows = jnp.transpose(w3.reshape(9 * C3, O), (1, 0))             # (O, 9*C3)
    w3_rows = w3_rows.at[:, 4 * C3:5 * C3].add(w_pw[:, :, 0, 0])       # centre tap
    w_pack = jnp.zeros((2 * O, Ktot), jnp.float32)
    w_pack = w_pack.at[:O, :9 * C3].set(w3_rows)
    w_pack = w_pack.at[O:, 9 * C3:].set(w_11[:, :, 0, 0])
    w_pack = w_pack.astype(compute_dtype)

    kernel = functools.partial(spconv_kernel, H=H, W=W, HW=HW, C3=C3, O=O, pad=pad)
    out = pl.pallas_call(
        kernel,
        out_shape=jax.ShapeDtypeStruct((B, O, HW), jnp.float32),
        grid_spec=pltpu.PrefetchScalarGridSpec(
            num_scalar_prefetch=0,
            grid=(nblk,),
            in_specs=[
                pl.BlockSpec((1, C, Pp), lambda i: (i, 0, 0)),
                pl.BlockSpec((2, P_blk), lambda i: (0, 0)),
                pl.BlockSpec((2 * O, Ktot), lambda i: (0, 0)),
            ],
            out_specs=pl.BlockSpec((batch_block, O, HW), lambda i: (i, 0, 0)),
            scratch_shapes=[pltpu.VMEM((Ktot, P_blk), compute_dtype)],
        ),
        compiler_params=pltpu.CompilerParams(
            dimension_semantics=("parallel",),
            vmem_limit_bytes=32 * 1024 * 1024,
        ),
    )(xp, coords, w_pack)

    # (B, O, HW) is already channel-major (NCHW): just unflatten the spatial axis.
    return out.reshape(B, O, H, W)


# ----------------------------------------------------------------------------
# Pure-JAX reference (mirrors the PyTorch forward) for correctness checking.
# ----------------------------------------------------------------------------
def spconv_reference(x, w_dw, w_pw, w_11, scale_ratio=2):
    B, C, H, W = x.shape
    C3 = int(C // scale_ratio)
    x3 = x[:, :C3]
    x1 = x[:, C3:]
    dn = ("NCHW", "OIHW", "NCHW")
    dw_out = lax.conv_general_dilated(
        x3, w_dw, (1, 1), ((1, 1), (1, 1)),
        dimension_numbers=dn, feature_group_count=2)
    pw_out = lax.conv_general_dilated(
        x3, w_pw, (1, 1), ((0, 0), (0, 0)), dimension_numbers=dn)
    out3 = dw_out + pw_out
    out1 = lax.conv_general_dilated(
        x1, w_11, (1, 1), ((0, 0), (0, 0)), dimension_numbers=dn)
    r3 = out3.mean(axis=(2, 3))
    r1 = out1.mean(axis=(2, 3))
    ratio = jax.nn.softmax(jnp.stack([r3, r1], axis=2), axis=2)
    return (out3 * ratio[:, :, 0][:, :, None, None]
            + out1 * ratio[:, :, 1][:, :, None, None])


if __name__ == "__main__":
    # SPConv(in_channels=4, out_channels=8, stride=1, scale_ratio=2)
    B, C, H, W = 2, 4, 16, 16
    O = 8
    scale_ratio = 2
    C3 = C // scale_ratio          # 3x3-branch input channels
    C1 = C - C3                    # 1x1-branch input channels

    key = jax.random.PRNGKey(0)
    kx, kd, kp, k1 = jax.random.split(key, 4)
    x = jax.random.normal(kx, (B, C, H, W), jnp.float32)
    w_dw = jax.random.normal(kd, (O, C3 // 2, 3, 3), jnp.float32) * 0.1
    w_pw = jax.random.normal(kp, (O, C3, 1, 1), jnp.float32) * 0.1
    w_11 = jax.random.normal(k1, (O, C1, 1, 1), jnp.float32) * 0.1

    ref = jax.block_until_ready(spconv_reference(x, w_dw, w_pw, w_11, scale_ratio))

    # f32, whole batch folded into a single grid step (default)
    out = jax.block_until_ready(
        spconv_forward(x, w_dw, w_pw, w_11, stride=1, scale_ratio=scale_ratio))
    assert out.shape == (B, O, H, W)
    assert jnp.allclose(out, ref, atol=1e-4, rtol=1e-4), (
        f"f32 max abs diff {jnp.max(jnp.abs(out - ref))}")

    # f32, one batch element per grid step (exercises the tiled "parallel" grid)
    out_t = jax.block_until_ready(
        spconv_forward(x, w_dw, w_pw, w_11, stride=1, scale_ratio=scale_ratio,
                       batch_block=1))
    assert jnp.allclose(out_t, ref, atol=1e-4, rtol=1e-4), (
        f"tiled max abs diff {jnp.max(jnp.abs(out_t - ref))}")

    # bf16 activations/weights on the MXU (f32 accumulate + f32 epilogue)
    out_bf = jax.block_until_ready(
        spconv_forward(x, w_dw, w_pw, w_11, stride=1, scale_ratio=scale_ratio,
                       compute_dtype=jnp.bfloat16))
    assert jnp.allclose(out_bf, ref, atol=5e-2, rtol=5e-2), (
        f"bf16 max abs diff {jnp.max(jnp.abs(out_bf - ref))}")

    print("KERNEL_OK")
</pallas_src>

<mosaic_0001>
module attributes {stable_mosaic.version = 11 : i64} {
  func.func @spconv_kernel(%arg0: i32, %arg1: memref<1x4x546xf32, #tpu.memory_space<vmem>>, %arg2: memref<2x512xi32, #tpu.memory_space<vmem>>, %arg3: memref<16x20xf32, #tpu.memory_space<vmem>>, %arg4: memref<2x8x256xf32, #tpu.memory_space<vmem>>, %arg5: memref<20x512xf32, #tpu.memory_space<vmem>>) attributes {dimension_semantics = [#tpu.dimension_semantics<parallel>], iteration_bounds = array<i64: 1>, scalar_prefetch = 0 : i64, scratch_operands = 1 : i64, tpu.core_type = #tpu.core_type<tc>, window_params = [{transform_indices = @transform_0, window_bounds = array<i64: 1, 4, 546>}, {pipeline_mode = #tpu.pipeline_mode<synchronous>, transform_indices = @transform_1, window_bounds = array<i64: 2, 512>}, {pipeline_mode = #tpu.pipeline_mode<synchronous>, transform_indices = @transform_2, window_bounds = array<i64: 16, 20>}, {transform_indices = @transform_3, window_bounds = array<i64: 2, 8, 256>}]} {
    %c0 = arith.constant 0 : index
    %c0_0 = arith.constant 0 : index
    %0 = vector.load %arg2[%c0, %c0_0] : memref<2x512xi32, #tpu.memory_space<vmem>>, vector<1x512xi32>
    %c1 = arith.constant 1 : index
    %c0_1 = arith.constant 0 : index
    %1 = vector.load %arg2[%c1, %c0_1] : memref<2x512xi32, #tpu.memory_space<vmem>>, vector<1x512xi32>
    %c1_i32 = arith.constant 1 : i32
    %2 = vector.broadcast %c1_i32 : i32 to vector<1x512xi32>
    %3 = arith.cmpi sge, %0, %2 : vector<1x512xi32>
    %c14_i32 = arith.constant 14 : i32
    %4 = vector.broadcast %c14_i32 : i32 to vector<1x512xi32>
    %5 = arith.cmpi sle, %0, %4 : vector<1x512xi32>
    %c1_i32_2 = arith.constant 1 : i32
    %6 = vector.broadcast %c1_i32_2 : i32 to vector<1x512xi32>
    %7 = arith.cmpi sge, %1, %6 : vector<1x512xi32>
    %c14_i32_3 = arith.constant 14 : i32
    %8 = vector.broadcast %c14_i32_3 : i32 to vector<1x512xi32>
    %9 = arith.cmpi sle, %1, %8 : vector<1x512xi32>
    %c0_4 = arith.constant 0 : index
    %c0_5 = arith.constant 0 : index
    %c0_6 = arith.constant 0 : index
    %10 = vector.load %arg1[%c0_4, %c0_5, %c0_6] : memref<1x4x546xf32, #tpu.memory_space<vmem>>, vector<1x2x512xf32>
    %11 = vector.shape_cast %10 : vector<1x2x512xf32> to vector<2x512xf32>
    %12 = arith.andi %3, %7 : vector<1x512xi1>
    %cst = arith.constant 0.000000e+00 : f32
    %13 = vector.shape_cast %12 : vector<1x512xi1> to vector<1x512xi1>
    %14 = vector.broadcast %13 : vector<1x512xi1> to vector<2x512xi1>
    %15 = vector.broadcast %cst : f32 to vector<2x512xf32>
    %16 = arith.select %14, %11, %15 : vector<2x512xi1>, vector<2x512xf32>
    %c0_7 = arith.constant 0 : index
    %c0_8 = arith.constant 0 : index
    %17 = vector.load %arg5[%c0_7, %c0_8] : memref<20x512xf32, #tpu.memory_space<vmem>>, vector<2x512xf32>
    tpu.vector_store %arg5[%c0_7, %c0_8], %16 {strides = array<i32>} : memref<20x512xf32, #tpu.memory_space<vmem>>, vector<2x512xf32>,
    %c0_9 = arith.constant 0 : index
    %c0_10 = arith.constant 0 : index
    %c1_11 = arith.constant 1 : index
    %18 = vector.load %arg1[%c0_9, %c0_10, %c1_11] : memref<1x4x546xf32, #tpu.memory_space<vmem>>, vector<1x2x512xf32>
    %19 = vector.shape_cast %18 : vector<1x2x512xf32> to vector<2x512xf32>
    %cst_12 = arith.constant 0.000000e+00 : f32
    %20 = vector.shape_cast %3 : vector<1x512xi1> to vector<1x512xi1>
    %21 = vector.broadcast %20 : vector<1x512xi1> to vector<2x512xi1>
    %22 = vector.broadcast %cst_12 : f32 to vector<2x512xf32>
    %23 = arith.select %21, %19, %22 : vector<2x512xi1>, vector<2x512xf32>
    %c2 = arith.constant 2 : index
    %c0_13 = arith.constant 0 : index
    %24 = vector.load %arg5[%c2, %c0_13] : memref<20x512xf32, #tpu.memory_space<vmem>>, vector<2x512xf32>
    tpu.vector_store %arg5[%c2, %c0_13], %23 {strides = array<i32>} : memref<20x512xf32, #tpu.memory_space<vmem>>, vector<2x512xf32>,
    %c0_14 = arith.constant 0 : index
    %c0_15 = arith.constant 0 : index
    %c2_16 = arith.constant 2 : index
    %25 = vector.load %arg1[%c0_14, %c0_15, %c2_16] : memref<1x4x546xf32, #tpu.memory_space<vmem>>, vector<1x2x512xf32>
    %26 = vector.shape_cast %25 : vector<1x2x512xf32> to vector<2x512xf32>
    %27 = arith.andi %3, %9 : vector<1x512xi1>
    %cst_17 = arith.constant 0.000000e+00 : f32
    %28 = vector.shape_cast %27 : vector<1x512xi1> to vector<1x512xi1>
    %29 = vector.broadcast %28 : vector<1x512xi1> to vector<2x512xi1>
    %30 = vector.broadcast %cst_17 : f32 to vector<2x512xf32>
    %31 = arith.select %29, %26, %30 : vector<2x512xi1>, vector<2x512xf32>
    %c4 = arith.constant 4 : index
    %c0_18 = arith.constant 0 : index
    %32 = vector.load %arg5[%c4, %c0_18] : memref<20x512xf32, #tpu.memory_space<vmem>>, vector<2x512xf32>
    tpu.vector_store %arg5[%c4, %c0_18], %31 {strides = array<i32>} : memref<20x512xf32, #tpu.memory_space<vmem>>, vector<2x512xf32>,
    %c0_19 = arith.constant 0 : index
    %c0_20 = arith.constant 0 : index
    %c16 = arith.constant 16 : index
    %33 = vector.load %arg1[%c0_19, %c0_20, %c16] : memref<1x4x546xf32, #tpu.memory_space<vmem>>, vector<1x2x512xf32>
    %34 = vector.shape_cast %33 : vector<1x2x512xf32> to vector<2x512xf32>
    %cst_21 = arith.constant 0.000000e+00 : f32
    %35 = vector.shape_cast %7 : vector<1x512xi1> to vector<1x512xi1>
    %36 = vector.broadcast %35 : vector<1x512xi1> to vector<2x512xi1>
    %37 = vector.broadcast %cst_21 : f32 to vector<2x512xf32>
    %38 = arith.select %36, %34, %37 : vector<2x512xi1>, vector<2x512xf32>
    %c6 = arith.constant 6 : index
    %c0_22 = arith.constant 0 : index
    %39 = vector.load %arg5[%c6, %c0_22] : memref<20x512xf32, #tpu.memory_space<vmem>>, vector<2x512xf32>
    tpu.vector_store %arg5[%c6, %c0_22], %38 {strides = array<i32>} : memref<20x512xf32, #tpu.memory_space<vmem>>, vector<2x512xf32>,
    %c0_23 = arith.constant 0 : index
    %c0_24 = arith.constant 0 : index
    %c17 = arith.constant 17 : index
    %40 = vector.load %arg1[%c0_23, %c0_24, %c17] : memref<1x4x546xf32, #tpu.memory_space<vmem>>, vector<1x2x512xf32>
    %41 = vector.shape_cast %40 : vector<1x2x512xf32> to vector<2x512xf32>
    %c8 = arith.constant 8 : index
    %c0_25 = arith.constant 0 : index
    %42 = vector.load %arg5[%c8, %c0_25] : memref<20x512xf32, #tpu.memory_space<vmem>>, vector<2x512xf32>
    tpu.vector_store %arg5[%c8, %c0_25], %41 {strides = array<i32>} : memref<20x512xf32, #tpu.memory_space<vmem>>, vector<2x512xf32>,
    %c0_26 = arith.constant 0 : index
    %c0_27 = arith.constant 0 : index
    %c18 = arith.constant 18 : index
    %43 = vector.load %arg1[%c0_26, %c0_27, %c18] : memref<1x4x546xf32, #tpu.memory_space<vmem>>, vector<1x2x512xf32>
    %44 = vector.shape_cast %43 : vector<1x2x512xf32> to vector<2x512xf32>
    %cst_28 = arith.constant 0.000000e+00 : f32
    %45 = vector.shape_cast %9 : vector<1x512xi1> to vector<1x512xi1>
    %46 = vector.broadcast %45 : vector<1x512xi1> to vector<2x512xi1>
    %47 = vector.broadcast %cst_28 : f32 to vector<2x512xf32>
    %48 = arith.select %46, %44, %47 : vector<2x512xi1>, vector<2x512xf32>
    %c10 = arith.constant 10 : index
    %c0_29 = arith.constant 0 : index
    %49 = vector.load %arg5[%c10, %c0_29] : memref<20x512xf32, #tpu.memory_space<vmem>>, vector<2x512xf32>
    tpu.vector_store %arg5[%c10, %c0_29], %48 {strides = array<i32>} : memref<20x512xf32, #tpu.memory_space<vmem>>, vector<2x512xf32>,
    %c0_30 = arith.constant 0 : index
    %c0_31 = arith.constant 0 : index
    %c32 = arith.constant 32 : index
    %50 = vector.load %arg1[%c0_30, %c0_31, %c32] : memref<1x4x546xf32, #tpu.memory_space<vmem>>, vector<1x2x512xf32>
    %51 = vector.shape_cast %50 : vector<1x2x512xf32> to vector<2x512xf32>
    %52 = arith.andi %5, %7 : vector<1x512xi1>
    %cst_32 = arith.constant 0.000000e+00 : f32
    %53 = vector.shape_cast %52 : vector<1x512xi1> to vector<1x512xi1>
    %54 = vector.broadcast %53 : vector<1x512xi1> to vector<2x512xi1>
    %55 = vector.broadcast %cst_32 : f32 to vector<2x512xf32>
    %56 = arith.select %54, %51, %55 : vector<2x512xi1>, vector<2x512xf32>
    %c12 = arith.constant 12 : index
    %c0_33 = arith.constant 0 : index
    %57 = vector.load %arg5[%c12, %c0_33] : memref<20x512xf32, #tpu.memory_space<vmem>>, vector<2x512xf32>
    tpu.vector_store %arg5[%c12, %c0_33], %56 {strides = array<i32>} : memref<20x512xf32, #tpu.memory_space<vmem>>, vector<2x512xf32>,
    %c0_34 = arith.constant 0 : index
    %c0_35 = arith.constant 0 : index
    %c33 = arith.constant 33 : index
    %58 = vector.load %arg1[%c0_34, %c0_35, %c33] : memref<1x4x546xf32, #tpu.memory_space<vmem>>, vector<1x2x512xf32>
    %59 = vector.shape_cast %58 : vector<1x2x512xf32> to vector<2x512xf32>
    %cst_36 = arith.constant 0.000000e+00 : f32
    %60 = vector.shape_cast %5 : vector<1x512xi1> to vector<1x512xi1>
    %61 = vector.broadcast %60 : vector<1x512xi1> to vector<2x512xi1>
    %62 = vector.broadcast %cst_36 : f32 to vector<2x512xf32>
    %63 = arith.select %61, %59, %62 : vector<2x512xi1>, vector<2x512xf32>
    %c14 = arith.constant 14 : index
    %c0_37 = arith.constant 0 : index
    %64 = vector.load %arg5[%c14, %c0_37] : memref<20x512xf32, #tpu.memory_space<vmem>>, vector<2x512xf32>
    tpu.vector_store %arg5[%c14, %c0_37], %63 {strides = array<i32>} : memref<20x512xf32, #tpu.memory_space<vmem>>, vector<2x512xf32>,
    %c0_38 = arith.constant 0 : index
    %c0_39 = arith.constant 0 : index
    %c34 = arith.constant 34 : index
    %65 = vector.load %arg1[%c0_38, %c0_39, %c34] : memref<1x4x546xf32, #tpu.memory_space<vmem>>, vector<1x2x512xf32>
    %66 = vector.shape_cast %65 : vector<1x2x512xf32> to vector<2x512xf32>
    %67 = arith.andi %5, %9 : vector<1x512xi1>
    %cst_40 = arith.constant 0.000000e+00 : f32
    %68 = vector.shape_cast %67 : vector<1x512xi1> to vector<1x512xi1>
    %69 = vector.broadcast %68 : vector<1x512xi1> to vector<2x512xi1>
    %70 = vector.broadcast %cst_40 : f32 to vector<2x512xf32>
    %71 = arith.select %69, %66, %70 : vector<2x512xi1>, vector<2x512xf32>
    %c16_41 = arith.constant 16 : index
    %c0_42 = arith.constant 0 : index
    %72 = vector.load %arg5[%c16_41, %c0_42] : memref<20x512xf32, #tpu.memory_space<vmem>>, vector<2x512xf32>
    tpu.vector_store %arg5[%c16_41, %c0_42], %71 {strides = array<i32>} : memref<20x512xf32, #tpu.memory_space<vmem>>, vector<2x512xf32>,
    %c0_43 = arith.constant 0 : index
    %c2_44 = arith.constant 2 : index
    %c17_45 = arith.constant 17 : index
    %73 = vector.load %arg1[%c0_43, %c2_44, %c17_45] : memref<1x4x546xf32, #tpu.memory_space<vmem>>, vector<1x2x512xf32>
    %74 = vector.shape_cast %73 : vector<1x2x512xf32> to vector<2x512xf32>
    %c18_46 = arith.constant 18 : index
    %c0_47 = arith.constant 0 : index
    %75 = vector.load %arg5[%c18_46, %c0_47] : memref<20x512xf32, #tpu.memory_space<vmem>>, vector<2x512xf32>
    tpu.vector_store %arg5[%c18_46, %c0_47], %74 {strides = array<i32>} : memref<20x512xf32, #tpu.memory_space<vmem>>, vector<2x512xf32>,
    %c0_48 = arith.constant 0 : index
    %c0_49 = arith.constant 0 : index
    %76 = vector.load %arg3[%c0_48, %c0_49] : memref<16x20xf32, #tpu.memory_space<vmem>>, vector<16x20xf32>
    %c0_50 = arith.constant 0 : index
    %c0_51 = arith.constant 0 : index
    %77 = vector.load %arg5[%c0_50, %c0_51] : memref<20x512xf32, #tpu.memory_space<vmem>>, vector<20x512xf32>
    %cst_52 = arith.constant dense<0.000000e+00> : vector<16x512xf32>
    %78 = tpu.matmul %76, %77, %cst_52 {dimension_numbers = #tpu.dot_dimension_numbers<[1], [0], [0], [1], [0, 0, 1, 1], [], []>} : vector<16x20xf32>, vector<20x512xf32>, vector<16x512xf32> -> vector<16x512xf32>
    %79 = vector.extract_strided_slice %78 {offsets = [0, 0], sizes = [8, 256], strides = [1, 1]} : vector<16x512xf32> to vector<8x256xf32>
    %80 = vector.extract_strided_slice %78 {offsets = [8, 0], sizes = [8, 256], strides = [1, 1]} : vector<16x512xf32> to vector<8x256xf32>
    %cst_53 = arith.constant dense<0.000000e+00> : vector<8xf32>
    %81 = vector.multi_reduction <add>, %79, %cst_53 [1] : vector<8x256xf32> to vector<8xf32>
    %82 = vector.shape_cast %81 : vector<8xf32> to vector<8x1xf32>
    %cst_54 = arith.constant 2.560000e+02 : f32
    %83 = vector.broadcast %cst_54 : f32 to vector<8x1xf32>
    %84 = arith.divf %82, %83 : vector<8x1xf32>
    %cst_55 = arith.constant dense<0.000000e+00> : vector<8xf32>
    %85 = vector.multi_reduction <add>, %80, %cst_55 [1] : vector<8x256xf32> to vector<8xf32>
    %86 = vector.shape_cast %85 : vector<8xf32> to vector<8x1xf32>
    %cst_56 = arith.constant 2.560000e+02 : f32
    %87 = vector.broadcast %cst_56 : f32 to vector<8x1xf32>
    %88 = arith.divf %86, %87 : vector<8x1xf32>
    %89 = arith.maximumf %84, %88 : vector<8x1xf32>
    %90 = arith.subf %84, %89 : vector<8x1xf32>
    %91 = math.exp %90 : vector<8x1xf32>
    %92 = arith.subf %88, %89 : vector<8x1xf32>
    %93 = math.exp %92 : vector<8x1xf32>
    %94 = arith.addf %91, %93 : vector<8x1xf32>
    %95 = tpu.reciprocal %94 {approx = true} : vector<8x1xf32> -> vector<8x1xf32>
    %96 = arith.mulf %94, %95 : vector<8x1xf32>
    %cst_57 = arith.constant 2.000000e+00 : f32
    %97 = vector.broadcast %cst_57 : f32 to vector<8x1xf32>
    %98 = arith.subf %97, %96 : vector<8x1xf32>
    %99 = arith.mulf %95, %98 : vector<8x1xf32>
    %100 = arith.mulf %91, %99 : vector<8x1xf32>
    %101 = arith.subf %79, %80 : vector<8x256xf32>
    %102 = vector.broadcast %100 : vector<8x1xf32> to vector<8x256xf32>
    %103 = arith.mulf %101, %102 : vector<8x256xf32>
    %104 = arith.addf %80, %103 : vector<8x256xf32>
    %c0_58 = arith.constant 0 : index
    %c0_59 = arith.constant 0 : index
    %c0_60 = arith.constant 0 : index
    %105 = vector.load %arg4[%c0_58, %c0_59, %c0_60] : memref<2x8x256xf32, #tpu.memory_space<vmem>>, vector<1x8x256xf32>
    %106 = vector.shape_cast %105 : vector<1x8x256xf32> to vector<8x256xf32>
    %107 = vector.shape_cast %104 : vector<8x256xf32> to vector<1x8x256xf32>
    tpu.vector_store %arg4[%c0_58, %c0_59, %c0_60], %107 {strides = array<i32>} : memref<2x8x256xf32, #tpu.memory_space<vmem>>, vector<1x8x256xf32>,
    %108 = vector.extract_strided_slice %78 {offsets = [0, 256], sizes = [8, 256], strides = [1, 1]} : vector<16x512xf32> to vector<8x256xf32>
    %109 = vector.extract_strided_slice %78 {offsets = [8, 256], sizes = [8, 256], strides = [1, 1]} : vector<16x512xf32> to vector<8x256xf32>
    %cst_61 = arith.constant dense<0.000000e+00> : vector<8xf32>
    %110 = vector.multi_reduction <add>, %108, %cst_61 [1] : vector<8x256xf32> to vector<8xf32>
    %111 = vector.shape_cast %110 : vector<8xf32> to vector<8x1xf32>
    %cst_62 = arith.constant 2.560000e+02 : f32
    %112 = vector.broadcast %cst_62 : f32 to vector<8x1xf32>
    %113 = arith.divf %111, %112 : vector<8x1xf32>
    %cst_63 = arith.constant dense<0.000000e+00> : vector<8xf32>
    %114 = vector.multi_reduction <add>, %109, %cst_63 [1] : vector<8x256xf32> to vector<8xf32>
    %115 = vector.shape_cast %114 : vector<8xf32> to vector<8x1xf32>
    %cst_64 = arith.constant 2.560000e+02 : f32
    %116 = vector.broadcast %cst_64 : f32 to vector<8x1xf32>
    %117 = arith.divf %115, %116 : vector<8x1xf32>
    %118 = arith.maximumf %113, %117 : vector<8x1xf32>
    %119 = arith.subf %113, %118 : vector<8x1xf32>
    %120 = math.exp %119 : vector<8x1xf32>
    %121 = arith.subf %117, %118 : vector<8x1xf32>
    %122 = math.exp %121 : vector<8x1xf32>
    %123 = arith.addf %120, %122 : vector<8x1xf32>
    %124 = tpu.reciprocal %123 {approx = true} : vector<8x1xf32> -> vector<8x1xf32>
    %125 = arith.mulf %123, %124 : vector<8x1xf32>
    %cst_65 = arith.constant 2.000000e+00 : f32
    %126 = vector.broadcast %cst_65 : f32 to vector<8x1xf32>
    %127 = arith.subf %126, %125 : vector<8x1xf32>
    %128 = arith.mulf %124, %127 : vector<8x1xf32>
    %129 = arith.mulf %120, %128 : vector<8x1xf32>
    %130 = arith.subf %108, %109 : vector<8x256xf32>
    %131 = vector.broadcast %129 : vector<8x1xf32> to vector<8x256xf32>
    %132 = arith.mulf %130, %131 : vector<8x256xf32>
    %133 = arith.addf %109, %132 : vector<8x256xf32>
    %c1_66 = arith.constant 1 : index
    %c0_67 = arith.constant 0 : index
    %c0_68 = arith.constant 0 : index
    %134 = vector.load %arg4[%c1_66, %c0_67, %c0_68] : memref<2x8x256xf32, #tpu.memory_space<vmem>>, vector<1x8x256xf32>
    %135 = vector.shape_cast %134 : vector<1x8x256xf32> to vector<8x256xf32>
    %136 = vector.shape_cast %133 : vector<8x256xf32> to vector<1x8x256xf32>
    tpu.vector_store %arg4[%c1_66, %c0_67, %c0_68], %136 {strides = array<i32>} : memref<2x8x256xf32, #tpu.memory_space<vmem>>, vector<1x8x256xf32>,
    return
  }
  func.func @transform_0(%arg0: i32) -> (i32, i32, i32) {
    %c0_i32 = arith.constant 0 : i32
    %c0_i32_0 = arith.constant 0 : i32
    %c0_i32_1 = arith.constant 0 : i32
    return %arg0, %c0_i32, %c0_i32_0 : i32, i32, i32
  }
  func.func @transform_1(%arg0: i32) -> (i32, i32) {
    %c0_i32 = arith.constant 0 : i32
    %c0_i32_0 = arith.constant 0 : i32
    %c0_i32_1 = arith.constant 0 : i32
    return %c0_i32, %c0_i32_0 : i32, i32
  }
  func.func @transform_2(%arg0: i32) -> (i32, i32) {
    %c0_i32 = arith.constant 0 : i32
    %c0_i32_0 = arith.constant 0 : i32
    %c0_i32_1 = arith.constant 0 : i32
    return %c0_i32, %c0_i32_0 : i32, i32
  }
  func.func @transform_3(%arg0: i32) -> (i32, i32, i32) {
    %c0_i32 = arith.constant 0 : i32
    %c0_i32_0 = arith.constant 0 : i32
    %c0_i32_1 = arith.constant 0 : i32
    return %arg0, %c0_i32, %c0_i32_0 : i32, i32, i32
  }
}

</mosaic_0001>

<llo_original>
// kernel: tpu_custom_call.1
$region0: #{tpu_custom_call.1}
  #allocation0 [shape = 'u32[]', space=smem, size = 0x4, offset = 0x4, fixed_abs, tag = 'smem constant byte address 0x4 - core index']
  #allocation1 [shape = 'u32[144,128]{1,0:T(1,128)}', space=vmem, size = 0x12000, scoped, tag = 'internal scratch']
  #allocation2 [shape = 'f32[20,512]{1,0:T(8,128)}', space=vmem, size = 0xc000, scoped, tag = 'scratch operand']
  %s0 = inlined_call_operand.hbm [shape: f32[1,4,546], index: 0, kind: input, shape index: {}]
  %s1 = inlined_call_operand.hbm [shape: s32[2,512], index: 1, kind: input, shape index: {}]
  %s2 = inlined_call_operand.hbm [shape: f32[16,20], index: 2, kind: input, shape index: {}]
  %s3 = inlined_call_operand.hbm [shape: f32[2,8,256], index: 3, kind: output, shape index: {}]
  %s4 = sld [smem:[#allocation0]]
  $region34: #{tpu_custom_call.1} parent=0
    _
  %s6 = ssub.s32 1, %s4
  %s7 = scalar_select 0, %s6, %s4
  $region1: #{tpu_custom_call.1} parent=0
    #allocation3 [shape = 'u8[10240]{0}', space=vmem, size = 0x2800, scoped, tag = 'input window, operand 0, single buffered']
    #allocation4 [shape = 's32[1]{0}', space=sflag, size = 0x4, scoped, tag = 'scoped memory for tpu_custom_call.1']
    #allocation5 [shape = 's32[1]{0}', space=sflag, size = 0x4, scoped, tag = 'scoped memory for tpu_custom_call.1']
    #allocation6 [shape = 'u8[4096]{0}', space=vmem, size = 0x1000, scoped, tag = 'input window, operand 1, single buffered']
    #allocation7 [shape = 's32[1]{0}', space=sflag, size = 0x4, scoped, tag = 'scoped memory for tpu_custom_call.1']
    #allocation8 [shape = 'u8[8192]{0}', space=vmem, size = 0x2000, scoped, tag = 'input window, operand 2, single buffered']
    #allocation9 [shape = 'u8[16384]{0}', space=vmem, size = 0x4000, scoped, tag = 'output window, operand 0, single buffered']
    %8 = vsyncpa [#allocation4], 0
    %9 = vsyncpa [#allocation7], 0
    %10 = vsyncpa [#allocation5], 0
    // Predicated region
    $region2: #{tpu_custom_call.1} parent=1 // pred_check
      _
    $region3: #{tpu_custom_call.1} parent=1 // pred_check_branch
      %12 = sbr.rel (0) target = $region5
    $region4: #{tpu_custom_call.1} parent=1 // pred_region
      %s14 = ssub.s32 320, 320
      %15 = vsyncadd [#allocation4], %s14
      %s17 = sshll.u32 [#allocation3], 4
      %s18 = int_to_ptr.vmem [resolvable:$true] %s17
      %20 = dma.hbm_to_vmem [thread:$0]  %s0, 320, %s18, [#allocation4]
    $region5: #{tpu_custom_call.1} parent=1 // pred_fallthru
      _
    // Predicated region
    $region6: #{tpu_custom_call.1} parent=1 // pred_check
      _
    $region7: #{tpu_custom_call.1} parent=1 // pred_check_branch
      %22 = sbr.rel (0) target = $region9
    $region8: #{tpu_custom_call.1} parent=1 // pred_region
      %s24 = ssub.s32 128, 128
      %25 = vsyncadd [#allocation7], %s24
      %s27 = sshll.u32 [#allocation6], 4
      %s28 = int_to_ptr.vmem [resolvable:$true] %s27
      %30 = dma.hbm_to_vmem [thread:$0]  %s1, 128, %s28, [#allocation7]
    $region9: #{tpu_custom_call.1} parent=1 // pred_fallthru
      _
    // Predicated region
    $region10: #{tpu_custom_call.1} parent=1 // pred_check
      _
    $region11: #{tpu_custom_call.1} parent=1 // pred_check_branch
      %32 = sbr.rel (0) target = $region13
    $region12: #{tpu_custom_call.1} parent=1 // pred_region
      %s34 = ssub.s32 256, 256
      %35 = vsyncadd [#allocation7], %s34
      %s36 = sshll.u32 [#allocation8], 4
      %s37 = int_to_ptr.vmem [resolvable:$true] %s36
      %42 = dma.hbm_to_vmem [thread:$0]  %s2, 256, %s37, [#allocation7], 128, 128, 8
    $region13: #{tpu_custom_call.1} parent=1 // pred_fallthru
      _
    // Predicated region
    $region14: #{tpu_custom_call.1} parent=1 // pred_check
      _
    $region15: #{tpu_custom_call.1} parent=1 // pred_check_branch
      %44 = sbr.rel (0) target = $region17
    $region16: #{tpu_custom_call.1} parent=1 // pred_region
      %45 = dma.done [#allocation4], 320
    $region17: #{tpu_custom_call.1} parent=1 // pred_fallthru
      _
    // Predicated region
    $region18: #{tpu_custom_call.1} parent=1 // pred_check
      _
    $region19: #{tpu_custom_call.1} parent=1 // pred_check_branch
      %47 = sbr.rel (0) target = $region21
    $region20: #{tpu_custom_call.1} parent=1 // pred_region
      %48 = dma.done [#allocation7], 128
    $region21: #{tpu_custom_call.1} parent=1 // pred_fallthru
      _
    // Predicated region
    $region22: #{tpu_custom_call.1} parent=1 // pred_check
      _
    $region23: #{tpu_custom_call.1} parent=1 // pred_check_branch
      %50 = sbr.rel (0) target = $region25
    $region24: #{tpu_custom_call.1} parent=1 // pred_region
      %51 = dma.done [#allocation7], 256
    $region25: #{tpu_custom_call.1} parent=1 // pred_fallthru
      _
    %v52 = vld [vmem:[#allocation6] ss:$2 sm:$0xf]
    %s53 = scalar_lea.vmem [#allocation6], 1
    %v54 = vld [vmem:[%s53] ss:$2 sm:$0xf]
    %vm55 = vcmp.ge.s32.totalorder %v52, 1
    %vm56 = vcmp.le.s32.totalorder %v52, 14
    %vm57 = vcmp.ge.s32.totalorder %v54, 1
    %vm58 = vcmp.le.s32.totalorder %v54, 14
    %v59 = vld [vmem:[#allocation3] sm:$0x33]
    %v60 = vld [vmem:[#allocation3 + $0x8] sm:$0x33]
    %vm61 = vmand %vm55, %vm57
    %v62 = vsel %vm61, 1, 0
    %v63 = vlaneseq
    %v64 = vshrl.u32 %v63, 7
    %v65 = vsub.s32 0, %v64
    %v66 = vrot.slane %v62, %v65
    %v67 = vlaneseq
    %v68 = vshrl.u32 %v67, 7
    %v69 = vsub.s32 1, %v68
    %v70 = vrot.slane %v62, %v69
    %v71 = vlaneseq
    %v72 = vshrl.u32 %v71, 7
    %v73 = vsub.s32 2, %v72
    %v74 = vrot.slane %v62, %v73
    %v75 = vlaneseq
    %v76 = vshrl.u32 %v75, 7
    %v77 = vsub.s32 3, %v76
    %v78 = vrot.slane %v62, %v77
    %vm79 = vcmp.eq.s32.totalorder %v66, 1
    %vm80 = vcmp.eq.s32.totalorder %v70, 1
    %vm81 = vcmp.eq.s32.totalorder %v74, 1
    %vm82 = vcmp.eq.s32.totalorder %v78, 1
    %v85 = vcombine.high %v59, %v59
    %v86 = vcombine.high %v60, %v60
    %v89 = vsel %vm79, %v59, 0.0
    %v90 = vsel %vm80, %v85, 0.0
    %v91 = vsel %vm81, %v60, 0.0
    %v92 = vsel %vm82, %v86, 0.0
    %93 = vst [vmem:[#allocation2] sm:$0x3] %v89
    %94 = vst [vmem:[#allocation2 + $0x8] sm:$0x3] %v90
    %95 = vst [vmem:[#allocation2 + $0x10] sm:$0x3] %v91
    %96 = vst [vmem:[#allocation2 + $0x18] sm:$0x3] %v92
    %v97 = vld [vmem:[#allocation3] sm:$0x33]
    %v98 = vld [vmem:[#allocation3 + $0x8] sm:$0x33]
    %v99 = vld [vmem:[#allocation3 + $0x10] sm:$0x3]
    %v100 = vsel %vm55, 1, 0
    %v101 = vlaneseq
    %v102 = vshrl.u32 %v101, 7
    %v103 = vsub.s32 0, %v102
    %v104 = vrot.slane %v100, %v103
    %v105 = vlaneseq
    %v106 = vshrl.u32 %v105, 7
    %v107 = vsub.s32 1, %v106
    %v108 = vrot.slane %v100, %v107
    %v109 = vlaneseq
    %v110 = vshrl.u32 %v109, 7
    %v111 = vsub.s32 2, %v110
    %v112 = vrot.slane %v100, %v111
    %v113 = vlaneseq
    %v114 = vshrl.u32 %v113, 7
    %v115 = vsub.s32 3, %v114
    %v116 = vrot.slane %v100, %v115
    %vm117 = vcmp.eq.s32.totalorder %v104, 1
    %vm118 = vcmp.eq.s32.totalorder %v108, 1
    %vm119 = vcmp.eq.s32.totalorder %v112, 1
    %vm120 = vcmp.eq.s32.totalorder %v116, 1
    %v124 = vcombine.high %v97, %v97
    %v125 = vcombine.high %v98, %v98
    %126 = vrot.lane.b32.xlu0 %v97, 127
    %v127 = vpop.permute.xlu0 %126
    %128 = vrot.lane.b32.xlu0 %v124, 127
    %v129 = vpop.permute.xlu0 %128
    %130 = vrot.lane.b32.xlu0 %v98, 127
    %v131 = vpop.permute.xlu0 %130
    %132 = vrot.lane.b32.xlu0 %v125, 127
    %v133 = vpop.permute.xlu0 %132
    %134 = vrot.lane.b32.xlu0 %v99, 127
    %v135 = vpop.permute.xlu0 %134
    %vm136 = vcmask 1039360
    %v137 = vsel %vm136, %v127, %v129
    %v138 = vsel %vm136, %v129, %v131
    %v139 = vsel %vm136, %v131, %v133
    %v140 = vsel %vm136, %v133, %v135
    %v145 = vsel %vm117, %v137, 0.0
    %v146 = vsel %vm118, %v138, 0.0
    %v147 = vsel %vm119, %v139, 0.0
    %v148 = vsel %vm120, %v140, 0.0
    %v153 = vrot.slane %v145, 6
    %v154 = vrot.slane %v146, 6
    %v155 = vrot.slane %v147, 6
    %v156 = vrot.slane %v148, 6
    %161 = vst [vmem:[#allocation2] sm:$0xc] %v153
    %162 = vst [vmem:[#allocation2 + $0x8] sm:$0xc] %v154
    %163 = vst [vmem:[#allocation2 + $0x10] sm:$0xc] %v155
    %164 = vst [vmem:[#allocation2 + $0x18] sm:$0xc] %v156
    %v165 = vld [vmem:[#allocation3] sm:$0x33]
    %v166 = vld [vmem:[#allocation3 + $0x8] sm:$0x33]
    %v167 = vld [vmem:[#allocation3 + $0x10] sm:$0x3]
    %vm168 = vmand %vm55, %vm58
    %v169 = vsel %vm168, 1, 0
    %v170 = vlaneseq
    %v171 = vshrl.u32 %v170, 7
    %v172 = vsub.s32 0, %v171
    %v173 = vrot.slane %v169, %v172
    %v174 = vlaneseq
    %v175 = vshrl.u32 %v174, 7
    %v176 = vsub.s32 1, %v175
    %v177 = vrot.slane %v169, %v176
    %v178 = vlaneseq
    %v179 = vshrl.u32 %v178, 7
    %v180 = vsub.s32 2, %v179
    %v181 = vrot.slane %v169, %v180
    %v182 = vlaneseq
    %v183 = vshrl.u32 %v182, 7
    %v184 = vsub.s32 3, %v183
    %v185 = vrot.slane %v169, %v184
    %vm186 = vcmp.eq.s32.totalorder %v173, 1
    %vm187 = vcmp.eq.s32.totalorder %v177, 1
    %vm188 = vcmp.eq.s32.totalorder %v181, 1
    %vm189 = vcmp.eq.s32.totalorder %v185, 1
    %v193 = vcombine.high %v165, %v165
    %v194 = vcombine.high %v166, %v166
    %195 = vrot.lane.b32.xlu0 %v165, 126
    %v196 = vpop.permute.xlu0 %195
    %197 = vrot.lane.b32.xlu0 %v193, 126
    %v198 = vpop.permute.xlu0 %197
    %199 = vrot.lane.b32.xlu0 %v166, 126
    %v200 = vpop.permute.xlu0 %199
    %201 = vrot.lane.b32.xlu0 %v194, 126
    %v202 = vpop.permute.xlu0 %201
    %203 = vrot.lane.b32.xlu0 %v167, 126
    %v204 = vpop.permute.xlu0 %203
    %vm205 = vcmask 1031168
    %v206 = vsel %vm205, %v196, %v198
    %v207 = vsel %vm205, %v198, %v200
    %v208 = vsel %vm205, %v200, %v202
    %v209 = vsel %vm205, %v202, %v204
    %v214 = vsel %vm186, %v206, 0.0
    %v215 = vsel %vm187, %v207, 0.0
    %v216 = vsel %vm188, %v208, 0.0
    %v217 = vsel %vm189, %v209, 0.0
    %v222 = vrot.slane %v214, 4
    %v223 = vrot.slane %v215, 4
    %v224 = vrot.slane %v216, 4
    %v225 = vrot.slane %v217, 4
    %230 = vst [vmem:[#allocation2] sm:$0x30] %v222
    %231 = vst [vmem:[#allocation2 + $0x8] sm:$0x30] %v223
    %232 = vst [vmem:[#allocation2 + $0x10] sm:$0x30] %v224
    %233 = vst [vmem:[#allocation2 + $0x18] sm:$0x30] %v225
    %v234 = vld [vmem:[#allocation3] sm:$0x33]
    %v235 = vld [vmem:[#allocation3 + $0x8] sm:$0x33]
    %v236 = vld [vmem:[#allocation3 + $0x10] sm:$0x3]
    %v237 = vsel %vm57, 1, 0
    %v238 = vlaneseq
    %v239 = vshrl.u32 %v238, 7
    %v240 = vsub.s32 0, %v239
    %v241 = vrot.slane %v237, %v240
    %v242 = vlaneseq
    %v243 = vshrl.u32 %v242, 7
    %v244 = vsub.s32 1, %v243
    %v245 = vrot.slane %v237, %v244
    %v246 = vlaneseq
    %v247 = vshrl.u32 %v246, 7
    %v248 = vsub.s32 2, %v247
    %v249 = vrot.slane %v237, %v248
    %v250 = vlaneseq
    %v251 = vshrl.u32 %v250, 7
    %v252 = vsub.s32 3, %v251
    %v253 = vrot.slane %v237, %v252
    %vm254 = vcmp.eq.s32.totalorder %v241, 1
    %vm255 = vcmp.eq.s32.totalorder %v245, 1
    %vm256 = vcmp.eq.s32.totalorder %v249, 1
    %vm257 = vcmp.eq.s32.totalorder %v253, 1
    %v261 = vcombine.high %v234, %v234
    %v262 = vcombine.high %v235, %v235
    %263 = vrot.lane.b32.xlu0 %v234, 112
    %v264 = vpop.permute.xlu0 %263
    %265 = vrot.lane.b32.xlu0 %v261, 112
    %v266 = vpop.permute.xlu0 %265
    %267 = vrot.lane.b32.xlu0 %v235, 112
    %v268 = vpop.permute.xlu0 %267
    %269 = vrot.lane.b32.xlu0 %v262, 112
    %v270 = vpop.permute.xlu0 %269
    %271 = vrot.lane.b32.xlu0 %v236, 112
    %v272 = vpop.permute.xlu0 %271
    %vm273 = vcmask 916480
    %v274 = vsel %vm273, %v264, %v266
    %v275 = vsel %vm273, %v266, %v268
    %v276 = vsel %vm273, %v268, %v270
    %v277 = vsel %vm273, %v270, %v272
    %v282 = vsel %vm254, %v274, 0.0
    %v283 = vsel %vm255, %v275, 0.0
    %v284 = vsel %vm256, %v276, 0.0
    %v285 = vsel %vm257, %v277, 0.0
    %v290 = vrot.slane %v282, 2
    %v291 = vrot.slane %v283, 2
    %v292 = vrot.slane %v284, 2
    %v293 = vrot.slane %v285, 2
    %298 = vst [vmem:[#allocation2] sm:$0xc0] %v290
    %299 = vst [vmem:[#allocation2 + $0x8] sm:$0xc0] %v291
    %300 = vst [vmem:[#allocation2 + $0x10] sm:$0xc0] %v292
    %301 = vst [vmem:[#allocation2 + $0x18] sm:$0xc0] %v293
    %v302 = vld [vmem:[#allocation3] sm:$0x33]
    %v303 = vld [vmem:[#allocation3 + $0x8] sm:$0x33]
    %v304 = vld [vmem:[#allocation3 + $0x10] sm:$0x3]
    %v308 = vcombine.high %v302, %v302
    %v309 = vcombine.high %v303, %v303
    %310 = vrot.lane.b32.xlu0 %v302, 111
    %v311 = vpop.permute.xlu0 %310
    %312 = vrot.lane.b32.xlu0 %v308, 111
    %v313 = vpop.permute.xlu0 %312
    %314 = vrot.lane.b32.xlu0 %v303, 111
    %v315 = vpop.permute.xlu0 %314
    %316 = vrot.lane.b32.xlu0 %v309, 111
    %v317 = vpop.permute.xlu0 %316
    %318 = vrot.lane.b32.xlu0 %v304, 111
    %v319 = vpop.permute.xlu0 %318
    %vm320 = vcmask 908288
    %v321 = vsel %vm320, %v311, %v313
    %v322 = vsel %vm320, %v313, %v315
    %v323 = vsel %vm320, %v315, %v317
    %v324 = vsel %vm320, %v317, %v319
    %329 = vst [vmem:[#allocation2 + $0x20] sm:$0x3] %v321
    %330 = vst [vmem:[#allocation2 + $0x28] sm:$0x3] %v322
    %331 = vst [vmem:[#allocation2 + $0x30] sm:$0x3] %v323
    %332 = vst [vmem:[#allocation2 + $0x38] sm:$0x3] %v324
    %v333 = vld [vmem:[#allocation3] sm:$0x33]
    %v334 = vld [vmem:[#allocation3 + $0x8] sm:$0x33]
    %v335 = vld [vmem:[#allocation3 + $0x10] sm:$0x3]
    %v336 = vsel %vm58, 1, 0
    %v337 = vlaneseq
    %v338 = vshrl.u32 %v337, 7
    %v339 = vsub.s32 0, %v338
    %v340 = vrot.slane %v336, %v339
    %v341 = vlaneseq
    %v342 = vshrl.u32 %v341, 7
    %v343 = vsub.s32 1, %v342
    %v344 = vrot.slane %v336, %v343
    %v345 = vlaneseq
    %v346 = vshrl.u32 %v345, 7
    %v347 = vsub.s32 2, %v346
    %v348 = vrot.slane %v336, %v347
    %v349 = vlaneseq
    %v350 = vshrl.u32 %v349, 7
    %v351 = vsub.s32 3, %v350
    %v352 = vrot.slane %v336, %v351
    %vm353 = vcmp.eq.s32.totalorder %v340, 1
    %vm354 = vcmp.eq.s32.totalorder %v344, 1
    %vm355 = vcmp.eq.s32.totalorder %v348, 1
    %vm356 = vcmp.eq.s32.totalorder %v352, 1
    %v360 = vcombine.high %v333, %v333
    %v361 = vcombine.high %v334, %v334
    %362 = vrot.lane.b32.xlu0 %v333, 110
    %v363 = vpop.permute.xlu0 %362
    %364 = vrot.lane.b32.xlu0 %v360, 110
    %v365 = vpop.permute.xlu0 %364
    %366 = vrot.lane.b32.xlu0 %v334, 110
    %v367 = vpop.permute.xlu0 %366
    %368 = vrot.lane.b32.xlu0 %v361, 110
    %v369 = vpop.permute.xlu0 %368
    %370 = vrot.lane.b32.xlu0 %v335, 110
    %v371 = vpop.permute.xlu0 %370
    %vm372 = vcmask 900096
    %v373 = vsel %vm372, %v363, %v365
    %v374 = vsel %vm372, %v365, %v367
    %v375 = vsel %vm372, %v367, %v369
    %v376 = vsel %vm372, %v369, %v371
    %v381 = vsel %vm353, %v373, 0.0
    %v382 = vsel %vm354, %v374, 0.0
    %v383 = vsel %vm355, %v375, 0.0
    %v384 = vsel %vm356, %v376, 0.0
    %v389 = vrot.slane %v381, 6
    %v390 = vrot.slane %v382, 6
    %v391 = vrot.slane %v383, 6
    %v392 = vrot.slane %v384, 6
    %397 = vst [vmem:[#allocation2 + $0x20] sm:$0xc] %v389
    %398 = vst [vmem:[#allocation2 + $0x28] sm:$0xc] %v390
    %399 = vst [vmem:[#allocation2 + $0x30] sm:$0xc] %v391
    %400 = vst [vmem:[#allocation2 + $0x38] sm:$0xc] %v392
    %v401 = vld [vmem:[#allocation3] sm:$0x33]
    %v402 = vld [vmem:[#allocation3 + $0x8] sm:$0x33]
    %v403 = vld [vmem:[#allocation3 + $0x10] sm:$0x3]
    %vm404 = vmand %vm56, %vm57
    %v405 = vsel %vm404, 1, 0
    %v406 = vlaneseq
    %v407 = vshrl.u32 %v406, 7
    %v408 = vsub.s32 0, %v407
    %v409 = vrot.slane %v405, %v408
    %v410 = vlaneseq
    %v411 = vshrl.u32 %v410, 7
    %v412 = vsub.s32 1, %v411
    %v413 = vrot.slane %v405, %v412
    %v414 = vlaneseq
    %v415 = vshrl.u32 %v414, 7
    %v416 = vsub.s32 2, %v415
    %v417 = vrot.slane %v405, %v416
    %v418 = vlaneseq
    %v419 = vshrl.u32 %v418, 7
    %v420 = vsub.s32 3, %v419
    %v421 = vrot.slane %v405, %v420
    %vm422 = vcmp.eq.s32.totalorder %v409, 1
    %vm423 = vcmp.eq.s32.totalorder %v413, 1
    %vm424 = vcmp.eq.s32.totalorder %v417, 1
    %vm425 = vcmp.eq.s32.totalorder %v421, 1
    %v429 = vcombine.high %v401, %v401
    %v430 = vcombine.high %v402, %v402
    %431 = vrot.lane.b32.xlu0 %v401, 96
    %v432 = vpop.permute.xlu0 %431
    %433 = vrot.lane.b32.xlu0 %v429, 96
    %v434 = vpop.permute.xlu0 %433
    %435 = vrot.lane.b32.xlu0 %v402, 96
    %v436 = vpop.permute.xlu0 %435
    %437 = vrot.lane.b32.xlu0 %v430, 96
    %v438 = vpop.permute.xlu0 %437
    %439 = vrot.lane.b32.xlu0 %v403, 96
    %v440 = vpop.permute.xlu0 %439
    %vm441 = vcmask 785408
    %v442 = vsel %vm441, %v432, %v434
    %v443 = vsel %vm441, %v434, %v436
    %v444 = vsel %vm441, %v436, %v438
    %v445 = vsel %vm441, %v438, %v440
    %v450 = vsel %vm422, %v442, 0.0
    %v451 = vsel %vm423, %v443, 0.0
    %v452 = vsel %vm424, %v444, 0.0
    %v453 = vsel %vm425, %v445, 0.0
    %v458 = vrot.slane %v450, 4
    %v459 = vrot.slane %v451, 4
    %v460 = vrot.slane %v452, 4
    %v461 = vrot.slane %v453, 4
    %466 = vst [vmem:[#allocation2 + $0x20] sm:$0x30] %v458
    %467 = vst [vmem:[#allocation2 + $0x28] sm:$0x30] %v459
    %468 = vst [vmem:[#allocation2 + $0x30] sm:$0x30] %v460
    %469 = vst [vmem:[#allocation2 + $0x38] sm:$0x30] %v461
    %v470 = vld [vmem:[#allocation3] sm:$0x33]
    %v471 = vld [vmem:[#allocation3 + $0x8] sm:$0x33]
    %v472 = vld [vmem:[#allocation3 + $0x10] sm:$0x3]
    %v473 = vsel %vm56, 1, 0
    %v474 = vlaneseq
    %v475 = vshrl.u32 %v474, 7
    %v476 = vsub.s32 0, %v475
    %v477 = vrot.slane %v473, %v476
    %v478 = vlaneseq
    %v479 = vshrl.u32 %v478, 7
    %v480 = vsub.s32 1, %v479
    %v481 = vrot.slane %v473, %v480
    %v482 = vlaneseq
    %v483 = vshrl.u32 %v482, 7
    %v484 = vsub.s32 2, %v483
    %v485 = vrot.slane %v473, %v484
    %v486 = vlaneseq
    %v487 = vshrl.u32 %v486, 7
    %v488 = vsub.s32 3, %v487
    %v489 = vrot.slane %v473, %v488
    %vm490 = vcmp.eq.s32.totalorder %v477, 1
    %vm491 = vcmp.eq.s32.totalorder %v481, 1
    %vm492 = vcmp.eq.s32.totalorder %v485, 1
    %vm493 = vcmp.eq.s32.totalorder %v489, 1
    %v497 = vcombine.high %v470, %v470
    %v498 = vcombine.high %v471, %v471
    %499 = vrot.lane.b32.xlu0 %v470, 95
    %v500 = vpop.permute.xlu0 %499
    %501 = vrot.lane.b32.xlu0 %v497, 95
    %v502 = vpop.permute.xlu0 %501
    %503 = vrot.lane.b32.xlu0 %v471, 95
    %v504 = vpop.permute.xlu0 %503
    %505 = vrot.lane.b32.xlu0 %v498, 95
    %v506 = vpop.permute.xlu0 %505
    %507 = vrot.lane.b32.xlu0 %v472, 95
    %v508 = vpop.permute.xlu0 %507
    %vm509 = vcmask 777216
    %v510 = vsel %vm509, %v500, %v502
    %v511 = vsel %vm509, %v502, %v504
    %v512 = vsel %vm509, %v504, %v506
    %v513 = vsel %vm509, %v506, %v508
    %v518 = vsel %vm490, %v510, 0.0
    %v519 = vsel %vm491, %v511, 0.0
    %v520 = vsel %vm492, %v512, 0.0
    %v521 = vsel %vm493, %v513, 0.0
    %v526 = vrot.slane %v518, 2
    %v527 = vrot.slane %v519, 2
    %v528 = vrot.slane %v520, 2
    %v529 = vrot.slane %v521, 2
    %534 = vst [vmem:[#allocation2 + $0x20] sm:$0xc0] %v526
    %535 = vst [vmem:[#allocation2 + $0x28] sm:$0xc0] %v527
    %536 = vst [vmem:[#allocation2 + $0x30] sm:$0xc0] %v528
    %537 = vst [vmem:[#allocation2 + $0x38] sm:$0xc0] %v529
    %v538 = vld [vmem:[#allocation3] sm:$0x33]
    %v539 = vld [vmem:[#allocation3 + $0x8] sm:$0x33]
    %v540 = vld [vmem:[#allocation3 + $0x10] sm:$0x3]
    %vm541 = vmand %vm56, %vm58
    %v542 = vsel %vm541, 1, 0
    %v543 = vlaneseq
    %v544 = vshrl.u32 %v543, 7
    %v545 = vsub.s32 0, %v544
    %v546 = vrot.slane %v542, %v545
    %v547 = vlaneseq
    %v548 = vshrl.u32 %v547, 7
    %v549 = vsub.s32 1, %v548
    %v550 = vrot.slane %v542, %v549
    %v551 = vlaneseq
    %v552 = vshrl.u32 %v551, 7
    %v553 = vsub.s32 2, %v552
    %v554 = vrot.slane %v542, %v553
    %v555 = vlaneseq
    %v556 = vshrl.u32 %v555, 7
    %v557 = vsub.s32 3, %v556
    %v558 = vrot.slane %v542, %v557
    %vm559 = vcmp.eq.s32.totalorder %v546, 1
    %vm560 = vcmp.eq.s32.totalorder %v550, 1
    %vm561 = vcmp.eq.s32.totalorder %v554, 1
    %vm562 = vcmp.eq.s32.totalorder %v558, 1
    %v566 = vcombine.high %v538, %v538
    %v567 = vcombine.high %v539, %v539
    %568 = vrot.lane.b32.xlu0 %v538, 94
    %v569 = vpop.permute.xlu0 %568
    %570 = vrot.lane.b32.xlu0 %v566, 94
    %v571 = vpop.permute.xlu0 %570
    %572 = vrot.lane.b32.xlu0 %v539, 94
    %v573 = vpop.permute.xlu0 %572
    %574 = vrot.lane.b32.xlu0 %v567, 94
    %v575 = vpop.permute.xlu0 %574
    %576 = vrot.lane.b32.xlu0 %v540, 94
    %v577 = vpop.permute.xlu0 %576
    %vm578 = vcmask 769024
    %v579 = vsel %vm578, %v569, %v571
    %v580 = vsel %vm578, %v571, %v573
    %v581 = vsel %vm578, %v573, %v575
    %v582 = vsel %vm578, %v575, %v577
    %v587 = vsel %vm559, %v579, 0.0
    %v588 = vsel %vm560, %v580, 0.0
    %v589 = vsel %vm561, %v581, 0.0
    %v590 = vsel %vm562, %v582, 0.0
    %591 = vst [vmem:[#allocation2 + $0x40] sm:$0x3] %v587
    %592 = vst [vmem:[#allocation2 + $0x48] sm:$0x3] %v588
    %593 = vst [vmem:[#allocation2 + $0x50] sm:$0x3] %v589
    %594 = vst [vmem:[#allocation2 + $0x58] sm:$0x3] %v590
    %v595 = vld [vmem:[#allocation3] sm:$0xcc]
    %v596 = vld [vmem:[#allocation3 + $0x8] sm:$0xcc]
    %v597 = vld [vmem:[#allocation3 + $0x10] sm:$0xc]
    %v601 = vcombine.high %v595, %v595
    %v602 = vcombine.high %v596, %v596
    %603 = vrot.lane.b32.xlu0 %v595, 111
    %v604 = vpop.permute.xlu0 %603
    %605 = vrot.lane.b32.xlu0 %v601, 111
    %v606 = vpop.permute.xlu0 %605
    %607 = vrot.lane.b32.xlu0 %v596, 111
    %v608 = vpop.permute.xlu0 %607
    %609 = vrot.lane.b32.xlu0 %v602, 111
    %v610 = vpop.permute.xlu0 %609
    %611 = vrot.lane.b32.xlu0 %v597, 111
    %v612 = vpop.permute.xlu0 %611
    %v613 = vsel %vm320, %v604, %v606
    %v614 = vsel %vm320, %v606, %v608
    %v615 = vsel %vm320, %v608, %v610
    %v616 = vsel %vm320, %v610, %v612
    %621 = vst [vmem:[#allocation2 + $0x40] sm:$0xc] %v613
    %622 = vst [vmem:[#allocation2 + $0x48] sm:$0xc] %v614
    %623 = vst [vmem:[#allocation2 + $0x50] sm:$0xc] %v615
    %624 = vst [vmem:[#allocation2 + $0x58] sm:$0xc] %v616
    %v625 = vld [vmem:[#allocation8] sm:$0xff]
    %v626 = vld [vmem:[#allocation8 + $0x8] sm:$0xff]
    %v627 = vld [vmem:[#allocation2] sm:$0xff]
    %v628 = vld [vmem:[#allocation2 + $0x8] sm:$0xff]
    %v629 = vld [vmem:[#allocation2 + $0x10] sm:$0xff]
    %v630 = vld [vmem:[#allocation2 + $0x18] sm:$0xff]
    %v631 = vld [vmem:[#allocation2 + $0x20] sm:$0xff]
    %v632 = vld [vmem:[#allocation2 + $0x28] sm:$0xff]
    %v633 = vld [vmem:[#allocation2 + $0x30] sm:$0xff]
    %v634 = vld [vmem:[#allocation2 + $0x38] sm:$0xff]
    %v635 = vld [vmem:[#allocation2 + $0x40] sm:$0xf]
    %v636 = vld [vmem:[#allocation2 + $0x48] sm:$0xf]
    %v637 = vld [vmem:[#allocation2 + $0x50] sm:$0xf]
    %v638 = vld [vmem:[#allocation2 + $0x58] sm:$0xf]
    %vm639 = vcmask 162816
    %v641 = vsel %vm639, %v625, 0
    %v644 = vsel %vm639, %v626, 0
    %vm646 = vcmask 1043456
    %v648 = vsel %vm646, %v635, 0
    %v651 = vsel %vm646, %v636, 0
    %v654 = vsel %vm646, %v637, 0
    %v657 = vsel %vm646, %v638, 0
    %659 = vmatprep.subr.mxu0 0.0
    %660 = vmatpush1.msra.mxu0 0.0
    %661 = vmatprep.subr.mxu0 0.0
    %662 = vmatpush1.msra.mxu0 0.0
    %663 = vmatprep.subr.mxu0 0.0
    %664 = vmatpush1.msra.mxu0 0.0
    %665 = vmatprep.subr.mxu0 0.0
    %666 = vmatpush1.msra.mxu0 0.0
    %667 = vmatprep.subr.mxu0 0.0
    %668 = vmatpush1.msra.mxu0 0.0
    %669 = vmatprep.subr.mxu0 0.0
    %670 = vmatpush1.msra.mxu0 0.0
    %671 = vmatprep.subr.mxu0 0.0
    %672 = vmatpush1.msra.mxu0 0.0
    %673 = vmatprep.subr.mxu0 0.0
    %674 = vmatpush1.msra.mxu0 0.0
    %675 = vmatprep.subr.mxu0 0.0
    %676 = vmatpush1.msra.mxu0 0.0
    %677 = vmatprep.subr.mxu0 0.0
    %678 = vmatpush1.msra.mxu0 0.0
    %679 = vmatprep.subr.mxu0 0.0
    %680 = vmatpush1.msra.mxu0 0.0
    %681 = vmatprep.subr.mxu0 0.0
    %682 = vmatpush1.msra.mxu0 0.0
    %683 = vmatprep.subr.mxu0 0.0
    %684 = vmatpush1.msra.mxu0 0.0
    %685 = vmatprep.subr.mxu0 %v651
    %686 = vmatpush1.msra.mxu0 %v648
    %687 = vmatprep.subr.mxu0 %v632
    %688 = vmatpush1.msra.mxu0 %v631
    %689 = vmatprep.subr.mxu0 %v628
    %690 = vmatpush1.msra.mxu0 %v627
    %691 = vmatprep.subr.mxu0 0.0
    %692 = vmatpush2.msra.mxu0 0.0
    %693 = vmatprep.subr.mxu0 0.0
    %694 = vmatpush2.msra.mxu0 0.0
    %695 = vmatprep.subr.mxu0 0.0
    %696 = vmatpush2.msra.mxu0 0.0
    %697 = vmatprep.subr.mxu0 0.0
    %698 = vmatpush2.msra.mxu0 0.0
    %699 = vmatprep.subr.mxu0 0.0
    %700 = vmatpush2.msra.mxu0 0.0
    %701 = vmatprep.subr.mxu0 0.0
    %702 = vmatpush2.msra.mxu0 0.0
    %703 = vmatprep.subr.mxu0 0.0
    %704 = vmatpush2.msra.mxu0 0.0
    %705 = vmatprep.subr.mxu0 0.0
    %706 = vmatpush2.msra.mxu0 0.0
    %707 = vmatprep.subr.mxu0 0.0
    %708 = vmatpush2.msra.mxu0 0.0
    %709 = vmatprep.subr.mxu0 0.0
    %710 = vmatpush2.msra.mxu0 0.0
    %711 = vmatprep.subr.mxu0 0.0
    %712 = vmatpush2.msra.mxu0 0.0
    %713 = vmatprep.subr.mxu0 0.0
    %714 = vmatpush2.msra.mxu0 0.0
    %715 = vmatprep.subr.mxu0 0.0
    %716 = vmatpush2.msra.mxu0 0.0
    %717 = vmatprep.subr.mxu0 0.0
    %718 = vmatpush2.msra.mxu0 0.0
    %719 = vmatprep.subr.mxu0 0.0
    %720 = vmatpush2.msra.mxu0 0.0
    %721 = vmatprep.subr.mxu0 0.0
    %722 = vmatpush2.msra.mxu0 0.0
    %723 = vmatprep.mubr.f32.mxu0 0.0
    %724 = vmatmul.mubr.f32.gmra.mxu0 %v641
    %v725 = vpop.f32.mrf.mxu0
    %v726 = vadd.f32 0.0, %v725
    %v727 = vpop.f32.mrf.mxu0
    %v728 = vadd.f32 0.0, %v727
    %729 = vmatprep.mubr.f32.mxu0 0.0
    %730 = vmatmul.mubr.f32.gmra.mxu0 %v644
    %v731 = vpop.f32.mrf.mxu0
    %v732 = vadd.f32 0.0, %v731
    %v733 = vpop.f32.mrf.mxu0
    %v734 = vadd.f32 0.0, %v733
    %735 = vdwg.mxu0
    %736 = vmatprep.subr.mxu0 0.0
    %737 = vmatpush1.msra.mxu0 0.0
    %738 = vmatprep.subr.mxu0 0.0
    %739 = vmatpush1.msra.mxu0 0.0
    %740 = vmatprep.subr.mxu0 0.0
    %741 = vmatpush1.msra.mxu0 0.0
    %742 = vmatprep.subr.mxu0 0.0
    %743 = vmatpush1.msra.mxu0 0.0
    %744 = vmatprep.subr.mxu0 0.0
    %745 = vmatpush1.msra.mxu0 0.0
    %746 = vmatprep.subr.mxu0 0.0
    %747 = vmatpush1.msra.mxu0 0.0
    %748 = vmatprep.subr.mxu0 0.0
    %749 = vmatpush1.msra.mxu0 0.0
    %750 = vmatprep.subr.mxu0 0.0
    %751 = vmatpush1.msra.mxu0 0.0
    %752 = vmatprep.subr.mxu0 0.0
    %753 = vmatpush1.msra.mxu0 0.0
    %754 = vmatprep.subr.mxu0 0.0
    %755 = vmatpush1.msra.mxu0 0.0
    %756 = vmatprep.subr.mxu0 0.0
    %757 = vmatpush1.msra.mxu0 0.0
    %758 = vmatprep.subr.mxu0 0.0
    %759 = vmatpush1.msra.mxu0 0.0
    %760 = vmatprep.subr.mxu0 0.0
    %761 = vmatpush1.msra.mxu0 0.0
    %762 = vmatprep.subr.mxu0 %v657
    %763 = vmatpush1.msra.mxu0 %v654
    %764 = vmatprep.subr.mxu0 %v634
    %765 = vmatpush1.msra.mxu0 %v633
    %766 = vmatprep.subr.mxu0 %v630
    %767 = vmatpush1.msra.mxu0 %v629
    %768 = vmatprep.subr.mxu0 0.0
    %769 = vmatpush2.msra.mxu0 0.0
    %770 = vmatprep.subr.mxu0 0.0
    %771 = vmatpush2.msra.mxu0 0.0
    %772 = vmatprep.subr.mxu0 0.0
    %773 = vmatpush2.msra.mxu0 0.0
    %774 = vmatprep.subr.mxu0 0.0
    %775 = vmatpush2.msra.mxu0 0.0
    %776 = vmatprep.subr.mxu0 0.0
    %777 = vmatpush2.msra.mxu0 0.0
    %778 = vmatprep.subr.mxu0 0.0
    %779 = vmatpush2.msra.mxu0 0.0
    %780 = vmatprep.subr.mxu0 0.0
    %781 = vmatpush2.msra.mxu0 0.0
    %782 = vmatprep.subr.mxu0 0.0
    %783 = vmatpush2.msra.mxu0 0.0
    %784 = vmatprep.subr.mxu0 0.0
    %785 = vmatpush2.msra.mxu0 0.0
    %786 = vmatprep.subr.mxu0 0.0
    %787 = vmatpush2.msra.mxu0 0.0
    %788 = vmatprep.subr.mxu0 0.0
    %789 = vmatpush2.msra.mxu0 0.0
    %790 = vmatprep.subr.mxu0 0.0
    %791 = vmatpush2.msra.mxu0 0.0
    %792 = vmatprep.subr.mxu0 0.0
    %793 = vmatpush2.msra.mxu0 0.0
    %794 = vmatprep.subr.mxu0 0.0
    %795 = vmatpush2.msra.mxu0 0.0
    %796 = vmatprep.subr.mxu0 0.0
    %797 = vmatpush2.msra.mxu0 0.0
    %798 = vmatprep.subr.mxu0 0.0
    %799 = vmatpush2.msra.mxu0 0.0
    %800 = vmatprep.mubr.f32.mxu0 0.0
    %801 = vmatmul.mubr.f32.gmra.mxu0 %v641
    %v802 = vpop.f32.mrf.mxu0
    %v803 = vadd.f32 0.0, %v802
    %v804 = vpop.f32.mrf.mxu0
    %v805 = vadd.f32 0.0, %v804
    %806 = vmatprep.mubr.f32.mxu0 0.0
    %807 = vmatmul.mubr.f32.gmra.mxu0 %v644
    %v808 = vpop.f32.mrf.mxu0
    %v809 = vadd.f32 0.0, %v808
    %v810 = vpop.f32.mrf.mxu0
    %v811 = vadd.f32 0.0, %v810
    %812 = vdwg.mxu0
    %v813 = vadd.f32 %v726, %v728
    %814 = vadd.xlane.f32.xlu0 %v813
    %v815 = vpop.xlane.xlu0 %814
    %v816 = vrcp.pop 256.0
    %v817 = vmul.f32 %v815, %v816
    %v818 = vadd.f32 %v732, %v734
    %819 = vadd.xlane.f32.xlu0 %v818
    %v820 = vpop.xlane.xlu0 %819
    %v821 = vmul.f32 %v820, %v816
    %v822 = vmax.f32 %v817, %v821
    %v823 = vsub.f32 %v817, %v822
    %v824 = vmul.f32 %v823, 1.442695
    %v825 = vpow.pop %v824
    %v826 = vsub.f32 %v821, %v822
    %v827 = vmul.f32 %v826, 1.442695
    %v828 = vpow.pop %v827
    %v829 = vadd.f32 %v825, %v828
    %v830 = vrcp.pop %v829
    %v831 = vmul.f32 %v829, %v830
    %v832 = vsub.f32 2.0, %v831
    %v833 = vmul.f32 %v830, %v832
    %v834 = vmul.f32 %v825, %v833
    %v835 = vsub.f32 %v726, %v732
    %v836 = vsub.f32 %v728, %v734
    %v837 = vmul.f32 %v835, %v834
    %v838 = vmul.f32 %v836, %v834
    %v839 = vadd.f32 %v732, %v837
    %v840 = vadd.f32 %v734, %v838
    %841 = vst [vmem:[#allocation9] sm:$0xff] %v839
    %842 = vst [vmem:[#allocation9 + $0x8] sm:$0xff] %v840
    %v843 = vadd.f32 %v803, %v805
    %844 = vadd.xlane.f32.xlu0 %v843
    %v845 = vpop.xlane.xlu0 %844
    %v846 = vmul.f32 %v845, %v816
    %v847 = vadd.f32 %v809, %v811
    %848 = vadd.xlane.f32.xlu0 %v847
    %v849 = vpop.xlane.xlu0 %848
    %v850 = vmul.f32 %v849, %v816
    %v851 = vmax.f32 %v846, %v850
    %v852 = vsub.f32 %v846, %v851
    %v853 = vmul.f32 %v852, 1.442695
    %v854 = vpow.pop %v853
    %v855 = vsub.f32 %v850, %v851
    %v856 = vmul.f32 %v855, 1.442695
    %v857 = vpow.pop %v856
    %v858 = vadd.f32 %v854, %v857
    %v859 = vrcp.pop %v858
    %v860 = vmul.f32 %v858, %v859
    %v861 = vsub.f32 2.0, %v860
    %v862 = vmul.f32 %v859, %v861
    %v863 = vmul.f32 %v854, %v862
    %v864 = vsub.f32 %v803, %v809
    %v865 = vsub.f32 %v805, %v811
    %v866 = vmul.f32 %v864, %v863
    %v867 = vmul.f32 %v865, %v863
    %v868 = vadd.f32 %v809, %v866
    %v869 = vadd.f32 %v811, %v867
    %s870 = scalar_lea.vmem [#allocation9], 16
    %871 = vst [vmem:[%s870] sm:$0xff] %v868
    %872 = vst [vmem:[%s870 + $0x8] sm:$0xff] %v869
    // Predicated region
    $region26: #{tpu_custom_call.1} parent=1 // pred_check
      _
    $region27: #{tpu_custom_call.1} parent=1 // pred_check_branch
      %874 = sbr.rel (0) target = $region29
    $region28: #{tpu_custom_call.1} parent=1 // pred_region
      %s876 = ssub.s32 512, 512
      %877 = vsyncadd [#allocation5], %s876
      %s878 = sshll.u32 [#allocation9], 4
      %s879 = int_to_ptr.vmem [resolvable:$true] %s878
      %884 = dma.vmem_to_hbm [thread:$0]  %s879, 512, %s3, [#allocation5], 256, 256, 16
    $region29: #{tpu_custom_call.1} parent=1 // pred_fallthru
      _
    // Predicated region
    $region30: #{tpu_custom_call.1} parent=1 // pred_check
      _
    $region31: #{tpu_custom_call.1} parent=1 // pred_check_branch
      %886 = sbr.rel (0) target = $region33
    $region32: #{tpu_custom_call.1} parent=1 // pred_region
      %887 = dma.done [#allocation5], 512
    $region33: #{tpu_custom_call.1} parent=1 // pred_fallthru
      _
    %888 = vsyncpa [#allocation4], 1
    %889 = vsyncpa [#allocation7], 1
    %890 = vsyncpa [#allocation5], 1

</llo_original>
